<compile_context>
chip_gen: v6e
topology: v6e:2x2x1
jax: 0.10.0
libtpu: 0.0.40
codegen_flags: <defaults>
</compile_context>

<pallas_src>
import jax
import jax.numpy as jnp
from jax.experimental import pallas as pl
from jax.experimental.pallas import tpu as pltpu


def mlp_softmax_kernel(x_ref, w1_ref, b1_ref, w2_ref, b2_ref, w3_ref, b3_ref,
                       out_ref):
    # layer_one + ReLU (bf16 MXU inputs, f32 accumulation)
    h = jnp.dot(x_ref[...], w1_ref[...], preferred_element_type=jnp.float32)
    h = jnp.maximum(h + b1_ref[...], 0.0)
    # layer_two + ReLU
    h = jnp.dot(h.astype(w2_ref.dtype), w2_ref[...],
                preferred_element_type=jnp.float32)
    h = jnp.maximum(h + b2_ref[...], 0.0)
    # shape_outputs (true out_dim width — no padded logit columns)
    logits = jnp.dot(h.astype(w3_ref.dtype), w3_ref[...],
                     preferred_element_type=jnp.float32)
    logits = logits + b3_ref[...]
    # numerically stable softmax over the last dim (exact normalization)
    m = jnp.max(logits, axis=-1, keepdims=True)
    e = jnp.exp(logits - m)
    denom = jnp.sum(e, axis=-1, keepdims=True)
    out_ref[...] = (e * pl.reciprocal(denom)).astype(out_ref.dtype)


def _round_up(x, m):
    return ((x + m - 1) // m) * m


def _choose_tiles(B, block_m):
    """Pick (B_pad, tm) with bounded padding, tm | B_pad, tm % 8 == 0."""
    if B <= 1024:
        # Minimal sublane-aligned padding; at most one wrapper pad of <8 rows.
        B_pad = _round_up(max(B, 8), 8)
        tm = B_pad
        # Split into two tiles for v7x megacore when the batch is big enough
        # and the split stays sublane-aligned.
        if tm >= 512 and (tm // 2) % 8 == 0:
            tm //= 2
        return B_pad, tm
    # Large batches: pad to a multiple of 256 (<= 255 wasted rows), pick the
    # largest tm that divides B_pad, is <= block_m, and leaves >= 2 grid steps.
    B_pad = _round_up(B, 256)
    n = B_pad // 256
    cap = min(block_m, max(256, B_pad // 2))
    tm = 256
    for d in range(1, n + 1):
        if n % d == 0 and 256 * d <= cap:
            tm = max(tm, 256 * d)
    return B_pad, tm


def mlp_forward(x, params, *, block_m=4096, compute_dtype=jnp.bfloat16):
    w1, b1, w2, b2, w3, b3 = params
    B, in_dim = x.shape
    hidden = w1.shape[1]
    out_dim = w3.shape[1]

    B_pad, tm = _choose_tiles(B, block_m)

    xp = x
    if B_pad != B:
        # TODO(synk): a cdiv grid with in-kernel tail masking would avoid this
        # extra pass over x for unaligned batch sizes; padding here is <8 rows
        # (small B) or <256 rows (large B), so the cost is bounded.
        xp = jnp.zeros((B_pad, in_dim), x.dtype).at[:B].set(x)

    # Low-precision MXU inputs; accumulation stays f32 inside the kernel.
    xp = xp.astype(compute_dtype)
    w1c = w1.astype(compute_dtype)
    w2c = w2.astype(compute_dtype)
    w3c = w3.astype(compute_dtype)

    act_spec = pl.BlockSpec((tm, in_dim), lambda i: (i, 0))
    out_spec = pl.BlockSpec((tm, out_dim), lambda i: (i, 0))
    resident = lambda arr: pl.BlockSpec(arr.shape, lambda i: (0, 0))

    flops = 2 * B_pad * (in_dim * hidden + hidden * hidden + hidden * out_dim)
    weight_bytes = sum(int(a.size) * a.dtype.itemsize
                       for a in (w1c, b1, w2c, b2, w3c, b3))
    bytes_accessed = (B_pad * in_dim * xp.dtype.itemsize
                      + B_pad * out_dim * 4
                      + weight_bytes)

    out = pl.pallas_call(
        mlp_softmax_kernel,
        out_shape=jax.ShapeDtypeStruct((B_pad, out_dim), jnp.float32),
        grid_spec=pl.GridSpec(
            grid=(B_pad // tm,),
            in_specs=[
                act_spec,
                resident(w1c), resident(b1),
                resident(w2c), resident(b2),
                resident(w3c), resident(b3),
            ],
            out_specs=out_spec,
        ),
        compiler_params=pltpu.CompilerParams(
            dimension_semantics=("parallel",),
            vmem_limit_bytes=32 * 1024 * 1024,
        ),
        cost_estimate=pl.CostEstimate(
            flops=flops,
            transcendentals=B_pad * out_dim,
            bytes_accessed=bytes_accessed,
        ),
    )(xp, w1c, b1, w2c, b2, w3c, b3)

    if B_pad != B:
        out = out[:B]
    return out


def init_params(key, input_dim, output_dim, size=128):
    # Deterministic init mimicking nn.Linear's uniform(-1/sqrt(fan_in), ...).
    ks = jax.random.split(key, 6)

    def lin(kw, kb, fan_in, fan_out):
        bound = 1.0 / jnp.sqrt(fan_in)
        w = jax.random.uniform(kw, (fan_in, fan_out), jnp.float32, -bound, bound)
        b = jax.random.uniform(kb, (1, fan_out), jnp.float32, -bound, bound)
        return w, b

    w1, b1 = lin(ks[0], ks[1], input_dim, size)
    w2, b2 = lin(ks[2], ks[3], size, size)
    w3, b3 = lin(ks[4], ks[5], size, output_dim)
    return (w1, b1, w2, b2, w3, b3)


def reference_forward(x, params):
    w1, b1, w2, b2, w3, b3 = params
    h = jax.nn.relu(x @ w1 + b1)
    h = jax.nn.relu(h @ w2 + b2)
    return jax.nn.softmax(h @ w3 + b3, axis=-1)


if __name__ == "__main__":
    key = jax.random.PRNGKey(0)
    k_x, k_p, k_x2 = jax.random.split(key, 3)

    batch, input_dim, output_dim, size = 8, 32, 16, 128
    x = jax.random.normal(k_x, (batch, input_dim), jnp.float32)
    params = init_params(k_p, input_dim, output_dim, size=size)

    out = mlp_forward(x, params)
    out = jax.block_until_ready(out)
    ref = reference_forward(x, params)
    assert out.shape == (batch, output_dim)
    # bf16 MXU inputs -> loosened value tolerance vs f32 reference.
    assert jnp.allclose(out, ref, atol=2e-2, rtol=2e-2)
    # Exact f32 normalization -> rows sum to 1 tightly.
    assert jnp.allclose(jnp.sum(out, axis=-1), 1.0, atol=1e-4)

    # Also exercise the unaligned-batch (row-padding) path once.
    x2 = jax.random.normal(k_x2, (13, input_dim), jnp.float32)
    out2 = jax.block_until_ready(mlp_forward(x2, params))
    ref2 = reference_forward(x2, params)
    assert out2.shape == (13, output_dim)
    assert jnp.allclose(out2, ref2, atol=2e-2, rtol=2e-2)

    print("KERNEL_OK")
</pallas_src>

<mosaic_0001>
module attributes {stable_mosaic.version = 11 : i64} {
  func.func @mlp_softmax_kernel(%arg0: i32, %arg1: memref<8x32xbf16, #tpu.memory_space<vmem>>, %arg2: memref<32x128xbf16, #tpu.memory_space<vmem>>, %arg3: memref<1x128xf32, #tpu.memory_space<vmem>>, %arg4: memref<128x128xbf16, #tpu.memory_space<vmem>>, %arg5: memref<1x128xf32, #tpu.memory_space<vmem>>, %arg6: memref<128x16xbf16, #tpu.memory_space<vmem>>, %arg7: memref<1x16xf32, #tpu.memory_space<vmem>>, %arg8: memref<8x16xf32, #tpu.memory_space<vmem>>) attributes {dimension_semantics = [#tpu.dimension_semantics<parallel>], iteration_bounds = array<i64: 1>, scalar_prefetch = 0 : i64, scratch_operands = 0 : i64, tpu.core_type = #tpu.core_type<tc>, window_params = [{transform_indices = @transform_0, window_bounds = array<i64: 8, 32>}, {pipeline_mode = #tpu.pipeline_mode<synchronous>, transform_indices = @transform_1, window_bounds = array<i64: 32, 128>}, {pipeline_mode = #tpu.pipeline_mode<synchronous>, transform_indices = @transform_2, window_bounds = array<i64: 1, 128>}, {pipeline_mode = #tpu.pipeline_mode<synchronous>, transform_indices = @transform_3, window_bounds = array<i64: 128, 128>}, {pipeline_mode = #tpu.pipeline_mode<synchronous>, transform_indices = @transform_4, window_bounds = array<i64: 1, 128>}, {pipeline_mode = #tpu.pipeline_mode<synchronous>, transform_indices = @transform_5, window_bounds = array<i64: 128, 16>}, {pipeline_mode = #tpu.pipeline_mode<synchronous>, transform_indices = @transform_6, window_bounds = array<i64: 1, 16>}, {transform_indices = @transform_7, window_bounds = array<i64: 8, 16>}]} {
    %c0 = arith.constant 0 : index
    %c0_0 = arith.constant 0 : index
    %0 = vector.load %arg1[%c0, %c0_0] : memref<8x32xbf16, #tpu.memory_space<vmem>>, vector<8x32xbf16>
    %c0_1 = arith.constant 0 : index
    %c0_2 = arith.constant 0 : index
    %1 = vector.load %arg2[%c0_1, %c0_2] : memref<32x128xbf16, #tpu.memory_space<vmem>>, vector<32x128xbf16>
    %cst = arith.constant dense<0.000000e+00> : vector<8x128xf32>
    %2 = tpu.matmul %0, %1, %cst {dimension_numbers = #tpu.dot_dimension_numbers<[1], [0], [0], [1], [0, 0, 1, 1], [], []>} : vector<8x32xbf16>, vector<32x128xbf16>, vector<8x128xf32> -> vector<8x128xf32>
    %c0_3 = arith.constant 0 : index
    %c0_4 = arith.constant 0 : index
    %3 = vector.load %arg3[%c0_3, %c0_4] : memref<1x128xf32, #tpu.memory_space<vmem>>, vector<1x128xf32>
    %4 = vector.broadcast %3 : vector<1x128xf32> to vector<8x128xf32>
    %5 = arith.addf %2, %4 : vector<8x128xf32>
    %cst_5 = arith.constant 0.000000e+00 : f32
    %6 = vector.broadcast %cst_5 : f32 to vector<8x128xf32>
    %7 = arith.maximumf %5, %6 : vector<8x128xf32>
    %8 = arith.truncf %7 : vector<8x128xf32> to vector<8x128xbf16>
    %c0_6 = arith.constant 0 : index
    %c0_7 = arith.constant 0 : index
    %9 = vector.load %arg4[%c0_6, %c0_7] : memref<128x128xbf16, #tpu.memory_space<vmem>>, vector<128x128xbf16>
    %cst_8 = arith.constant dense<0.000000e+00> : vector<8x128xf32>
    %10 = tpu.matmul %8, %9, %cst_8 {dimension_numbers = #tpu.dot_dimension_numbers<[1], [0], [0], [1], [0, 0, 1, 1], [], []>} : vector<8x128xbf16>, vector<128x128xbf16>, vector<8x128xf32> -> vector<8x128xf32>
    %c0_9 = arith.constant 0 : index
    %c0_10 = arith.constant 0 : index
    %11 = vector.load %arg5[%c0_9, %c0_10] : memref<1x128xf32, #tpu.memory_space<vmem>>, vector<1x128xf32>
    %12 = vector.broadcast %11 : vector<1x128xf32> to vector<8x128xf32>
    %13 = arith.addf %10, %12 : vector<8x128xf32>
    %cst_11 = arith.constant 0.000000e+00 : f32
    %14 = vector.broadcast %cst_11 : f32 to vector<8x128xf32>
    %15 = arith.maximumf %13, %14 : vector<8x128xf32>
    %16 = arith.truncf %15 : vector<8x128xf32> to vector<8x128xbf16>
    %c0_12 = arith.constant 0 : index
    %c0_13 = arith.constant 0 : index
    %17 = vector.load %arg6[%c0_12, %c0_13] : memref<128x16xbf16, #tpu.memory_space<vmem>>, vector<128x16xbf16>
    %cst_14 = arith.constant dense<0.000000e+00> : vector<8x16xf32>
    %18 = tpu.matmul %16, %17, %cst_14 {dimension_numbers = #tpu.dot_dimension_numbers<[1], [0], [0], [1], [0, 0, 1, 1], [], []>} : vector<8x128xbf16>, vector<128x16xbf16>, vector<8x16xf32> -> vector<8x16xf32>
    %c0_15 = arith.constant 0 : index
    %c0_16 = arith.constant 0 : index
    %19 = vector.load %arg7[%c0_15, %c0_16] : memref<1x16xf32, #tpu.memory_space<vmem>>, vector<1x16xf32>
    %20 = vector.broadcast %19 : vector<1x16xf32> to vector<8x16xf32>
    %21 = arith.addf %18, %20 : vector<8x16xf32>
    %cst_17 = arith.constant dense<0xFF800000> : vector<8xf32>
    %22 = vector.multi_reduction <maximumf>, %21, %cst_17 [1] : vector<8x16xf32> to vector<8xf32>
    %23 = vector.shape_cast %22 : vector<8xf32> to vector<8x1xf32>
    %24 = vector.broadcast %23 : vector<8x1xf32> to vector<8x16xf32>
    %25 = arith.subf %21, %24 : vector<8x16xf32>
    %26 = math.exp %25 : vector<8x16xf32>
    %cst_18 = arith.constant dense<0.000000e+00> : vector<8xf32>
    %27 = vector.multi_reduction <add>, %26, %cst_18 [1] : vector<8x16xf32> to vector<8xf32>
    %28 = vector.shape_cast %27 : vector<8xf32> to vector<8x1xf32>
    %29 = tpu.reciprocal %28 : vector<8x1xf32> -> vector<8x1xf32>
    %30 = vector.broadcast %29 : vector<8x1xf32> to vector<8x16xf32>
    %31 = arith.mulf %26, %30 : vector<8x16xf32>
    %c0_19 = arith.constant 0 : index
    %c0_20 = arith.constant 0 : index
    %32 = vector.load %arg8[%c0_19, %c0_20] : memref<8x16xf32, #tpu.memory_space<vmem>>, vector<8x16xf32>
    tpu.vector_store %arg8[%c0_19, %c0_20], %31 {strides = array<i32>} : memref<8x16xf32, #tpu.memory_space<vmem>>, vector<8x16xf32>,
    return
  }
  func.func @transform_0(%arg0: i32) -> (i32, i32) {
    %c0_i32 = arith.constant 0 : i32
    %c0_i32_0 = arith.constant 0 : i32
    return %arg0, %c0_i32 : i32, i32
  }
  func.func @transform_1(%arg0: i32) -> (i32, i32) {
    %c0_i32 = arith.constant 0 : i32
    %c0_i32_0 = arith.constant 0 : i32
    %c0_i32_1 = arith.constant 0 : i32
    return %c0_i32, %c0_i32_0 : i32, i32
  }
  func.func @transform_2(%arg0: i32) -> (i32, i32) {
    %c0_i32 = arith.constant 0 : i32
    %c0_i32_0 = arith.constant 0 : i32
    %c0_i32_1 = arith.constant 0 : i32
    return %c0_i32, %c0_i32_0 : i32, i32
  }
  func.func @transform_3(%arg0: i32) -> (i32, i32) {
    %c0_i32 = arith.constant 0 : i32
    %c0_i32_0 = arith.constant 0 : i32
    %c0_i32_1 = arith.constant 0 : i32
    return %c0_i32, %c0_i32_0 : i32, i32
  }
  func.func @transform_4(%arg0: i32) -> (i32, i32) {
    %c0_i32 = arith.constant 0 : i32
    %c0_i32_0 = arith.constant 0 : i32
    %c0_i32_1 = arith.constant 0 : i32
    return %c0_i32, %c0_i32_0 : i32, i32
  }
  func.func @transform_5(%arg0: i32) -> (i32, i32) {
    %c0_i32 = arith.constant 0 : i32
    %c0_i32_0 = arith.constant 0 : i32
    %c0_i32_1 = arith.constant 0 : i32
    return %c0_i32, %c0_i32_0 : i32, i32
  }
  func.func @transform_6(%arg0: i32) -> (i32, i32) {
    %c0_i32 = arith.constant 0 : i32
    %c0_i32_0 = arith.constant 0 : i32
    %c0_i32_1 = arith.constant 0 : i32
    return %c0_i32, %c0_i32_0 : i32, i32
  }
  func.func @transform_7(%arg0: i32) -> (i32, i32) {
    %c0_i32 = arith.constant 0 : i32
    %c0_i32_0 = arith.constant 0 : i32
    return %arg0, %c0_i32 : i32, i32
  }
}

</mosaic_0001>

<llo_original>
// kernel: tpu_custom_call.1
$region0: #{tpu_custom_call.1}
  #allocation0 [shape = 'u32[]', space=smem, size = 0x4, offset = 0x4, fixed_abs, tag = 'smem constant byte address 0x4 - core index']
  #allocation1 [shape = 'u32[144,128]{1,0:T(1,128)}', space=vmem, size = 0x12000, scoped, tag = 'internal scratch']
  %s0 = inlined_call_operand.vmem [shape: bf16[8,32], index: 0, kind: input, shape index: {}]
  %s1 = inlined_call_operand.hbm [shape: bf16[32,128], index: 1, kind: input, shape index: {}]
  %s2 = inlined_call_operand.vmem [shape: f32[1,128], index: 2, kind: input, shape index: {}]
  %s3 = inlined_call_operand.vmem [shape: bf16[128,128], index: 3, kind: input, shape index: {}]
  %s4 = inlined_call_operand.vmem [shape: f32[1,128], index: 4, kind: input, shape index: {}]
  %s5 = inlined_call_operand.vmem [shape: bf16[128,16], index: 5, kind: input, shape index: {}]
  %s6 = inlined_call_operand.vmem [shape: f32[1,16], index: 6, kind: input, shape index: {}]
  %s7 = inlined_call_operand.hbm [shape: f32[8,16], index: 7, kind: output, shape index: {}]
  %s8 = sld [smem:[#allocation0]]
  $region42: #{tpu_custom_call.1} parent=0
    _
  %s10 = ssub.s32 1, %s8
  %s11 = scalar_select 0, %s10, %s8
  $region1: #{tpu_custom_call.1} parent=0
    #allocation2 [shape = 'u8[8192]{0}', space=vmem, size = 0x2000, scoped, tag = 'input window, operand 1, single buffered']
    #allocation3 [shape = 's32[1]{0}', space=sflag, size = 0x4, scoped, tag = 'scoped memory for tpu_custom_call.1']
    #allocation4 [shape = 's32[1]{0}', space=sflag, size = 0x4, scoped, tag = 'scoped memory for tpu_custom_call.1']
    #allocation5 [shape = 'u8[4096]{0}', space=vmem, size = 0x1000, scoped, tag = 'output window, operand 0, single buffered']
    %12 = vsyncpa [#allocation3], 0
    %13 = vsyncpa [#allocation4], 0
    // Predicated region
    $region2: #{tpu_custom_call.1} parent=1 // pred_check
      _
    $region3: #{tpu_custom_call.1} parent=1 // pred_check_branch
      %15 = sbr.rel (0) target = $region5
    $region4: #{tpu_custom_call.1} parent=1 // pred_region
      _
    $region5: #{tpu_custom_call.1} parent=1 // pred_fallthru
      _
    // Predicated region
    $region6: #{tpu_custom_call.1} parent=1 // pred_check
      _
    $region7: #{tpu_custom_call.1} parent=1 // pred_check_branch
      %17 = sbr.rel (0) target = $region9
    $region8: #{tpu_custom_call.1} parent=1 // pred_region
      %s19 = ssub.s32 256, 256
      %20 = vsyncadd [#allocation3], %s19
      %s21 = sshll.u32 [#allocation2], 4
      %s22 = int_to_ptr.vmem [resolvable:$true] %s21
      %27 = dma.hbm_to_vmem [thread:$0]  %s1, 256, %s22, [#allocation3], 64, 64, 4
    $region9: #{tpu_custom_call.1} parent=1 // pred_fallthru
      _
    // Predicated region
    $region10: #{tpu_custom_call.1} parent=1 // pred_check
      _
    $region11: #{tpu_custom_call.1} parent=1 // pred_check_branch
      %29 = sbr.rel (0) target = $region13
    $region12: #{tpu_custom_call.1} parent=1 // pred_region
      _
    $region13: #{tpu_custom_call.1} parent=1 // pred_fallthru
      _
    // Predicated region
    $region14: #{tpu_custom_call.1} parent=1 // pred_check
      _
    $region15: #{tpu_custom_call.1} parent=1 // pred_check_branch
      %31 = sbr.rel (0) target = $region17
    $region16: #{tpu_custom_call.1} parent=1 // pred_region
      _
    $region17: #{tpu_custom_call.1} parent=1 // pred_fallthru
      _
    // Predicated region
    $region18: #{tpu_custom_call.1} parent=1 // pred_check
      _
    $region19: #{tpu_custom_call.1} parent=1 // pred_check_branch
      %33 = sbr.rel (0) target = $region21
    $region20: #{tpu_custom_call.1} parent=1 // pred_region
      _
    $region21: #{tpu_custom_call.1} parent=1 // pred_fallthru
      _
    // Predicated region
    $region22: #{tpu_custom_call.1} parent=1 // pred_check
      _
    $region23: #{tpu_custom_call.1} parent=1 // pred_check_branch
      %35 = sbr.rel (0) target = $region25
    $region24: #{tpu_custom_call.1} parent=1 // pred_region
      _
    $region25: #{tpu_custom_call.1} parent=1 // pred_fallthru
      _
    // Predicated region
    $region26: #{tpu_custom_call.1} parent=1 // pred_check
      _
    $region27: #{tpu_custom_call.1} parent=1 // pred_check_branch
      %37 = sbr.rel (0) target = $region29
    $region28: #{tpu_custom_call.1} parent=1 // pred_region
      _
    $region29: #{tpu_custom_call.1} parent=1 // pred_fallthru
      _
    // Predicated region
    $region30: #{tpu_custom_call.1} parent=1 // pred_check
      _
    $region31: #{tpu_custom_call.1} parent=1 // pred_check_branch
      %39 = sbr.rel (0) target = $region33
    $region32: #{tpu_custom_call.1} parent=1 // pred_region
      %40 = dma.done [#allocation3], 256
    $region33: #{tpu_custom_call.1} parent=1 // pred_fallthru
      _
    %v42 = vld [vmem:[%s0] sm:$0xf]
    %v43 = vld [vmem:[#allocation2] sm:$0xf]
    %v44 = vld [vmem:[#allocation2 + $0x4] sm:$0xf]
    %v45 = vld [vmem:[#allocation2 + $0x8] sm:$0xf]
    %v46 = vld [vmem:[#allocation2 + $0xc] sm:$0xf]
    %v47 = vld [vmem:[%s2] sm:$0x1]
    %v49 = vlaneseq
    %v50 = vshrl.u32 %v49, 7
    %v51 = vsub.s32 0, %v50
    %v52 = vrot.slane %v47, %v51
    %v58 = vunpack.c.l.b16 %v43
    %v59 = vunpack.c.l.b16 %v44
    %v60 = vunpack.c.l.b16 %v45
    %v61 = vunpack.c.l.b16 %v46
    %v62 = vpack.c.b16 %v59, %v58
    %v63 = vpack.c.b16 %v61, %v60
    %vm66 = vcmask 261120
    %v68 = vsel %vm66, %v42, 0
    %70 = vmatprep.subr.bf16.mxu0 0
    %71 = vmatpush1.bf16.msra.mxu0 0
    %72 = vmatprep.subr.bf16.mxu0 0
    %73 = vmatpush1.bf16.msra.mxu0 0
    %74 = vmatprep.subr.bf16.mxu0 0
    %75 = vmatpush1.bf16.msra.mxu0 0
    %76 = vmatprep.subr.bf16.mxu0 0
    %77 = vmatpush1.bf16.msra.mxu0 0
    %78 = vmatprep.subr.bf16.mxu0 0
    %79 = vmatpush1.bf16.msra.mxu0 0
    %80 = vmatprep.subr.bf16.mxu0 0
    %81 = vmatpush1.bf16.msra.mxu0 0
    %82 = vmatprep.subr.bf16.mxu0 0
    %83 = vmatpush1.bf16.msra.mxu0 %v63
    %84 = vmatprep.subr.bf16.mxu0 0
    %85 = vmatpush1.bf16.msra.mxu0 %v62
    %86 = vmatprep.subr.bf16.mxu0 0
    %87 = vmatpush2.bf16.msra.mxu0 0
    %88 = vmatprep.subr.bf16.mxu0 0
    %89 = vmatpush2.bf16.msra.mxu0 0
    %90 = vmatprep.subr.bf16.mxu0 0
    %91 = vmatpush2.bf16.msra.mxu0 0
    %92 = vmatprep.subr.bf16.mxu0 0
    %93 = vmatpush2.bf16.msra.mxu0 0
    %94 = vmatprep.subr.bf16.mxu0 0
    %95 = vmatpush2.bf16.msra.mxu0 0
    %96 = vmatprep.subr.bf16.mxu0 0
    %97 = vmatpush2.bf16.msra.mxu0 0
    %98 = vmatprep.subr.bf16.mxu0 0
    %99 = vmatpush2.bf16.msra.mxu0 0
    %100 = vmatprep.subr.bf16.mxu0 0
    %101 = vmatpush2.bf16.msra.mxu0 0
    %102 = vmatprep.mubr.bf16.mxu0 0
    %103 = vmatmul.mubr.bf16.gmra.mxu0 %v68
    %v104 = vpop.f32.mrf.mxu0
    %v105 = vadd.f32 %v52, %v104
    %v106 = vpop.f32.mrf.mxu0
    %v107 = vpop.f32.mrf.mxu0
    %v108 = vpop.f32.mrf.mxu0
    %109 = vdwg.mxu0
    %v110 = vmax.f32 %v105, 0.0
    %v111 = vpack.c.bf16 %v110, %v110
    %v112 = vld [vmem:[%s3] sm:$0xf]
    %v113 = vld [vmem:[%s3 + $0x4] sm:$0xf]
    %v114 = vld [vmem:[%s3 + $0x8] sm:$0xf]
    %v115 = vld [vmem:[%s3 + $0xc] sm:$0xf]
    %v116 = vld [vmem:[%s3 + $0x10] sm:$0xf]
    %v117 = vld [vmem:[%s3 + $0x14] sm:$0xf]
    %v118 = vld [vmem:[%s3 + $0x18] sm:$0xf]
    %v119 = vld [vmem:[%s3 + $0x1c] sm:$0xf]
    %v120 = vld [vmem:[%s3 + $0x20] sm:$0xf]
    %v121 = vld [vmem:[%s3 + $0x24] sm:$0xf]
    %v122 = vld [vmem:[%s3 + $0x28] sm:$0xf]
    %v123 = vld [vmem:[%s3 + $0x2c] sm:$0xf]
    %v124 = vld [vmem:[%s3 + $0x30] sm:$0xf]
    %v125 = vld [vmem:[%s3 + $0x34] sm:$0xf]
    %v126 = vld [vmem:[%s3 + $0x38] sm:$0xf]
    %v127 = vld [vmem:[%s3 + $0x3c] sm:$0xf]
    %v128 = vld [vmem:[%s4] sm:$0x1]
    %v130 = vlaneseq
    %v131 = vshrl.u32 %v130, 7
    %v132 = vsub.s32 0, %v131
    %v133 = vrot.slane %v128, %v132
    %v151 = vunpack.c.l.b16 %v112
    %v152 = vunpack.c.l.b16 %v113
    %v153 = vunpack.c.l.b16 %v114
    %v154 = vunpack.c.l.b16 %v115
    %v155 = vunpack.c.l.b16 %v116
    %v156 = vunpack.c.l.b16 %v117
    %v157 = vunpack.c.l.b16 %v118
    %v158 = vunpack.c.l.b16 %v119
    %v159 = vunpack.c.l.b16 %v120
    %v160 = vunpack.c.l.b16 %v121
    %v161 = vunpack.c.l.b16 %v122
    %v162 = vunpack.c.l.b16 %v123
    %v163 = vunpack.c.l.b16 %v124
    %v164 = vunpack.c.l.b16 %v125
    %v165 = vunpack.c.l.b16 %v126
    %v166 = vunpack.c.l.b16 %v127
    %v167 = vpack.c.b16 %v152, %v151
    %v168 = vpack.c.b16 %v154, %v153
    %v169 = vpack.c.b16 %v156, %v155
    %v170 = vpack.c.b16 %v158, %v157
    %v171 = vpack.c.b16 %v160, %v159
    %v172 = vpack.c.b16 %v162, %v161
    %v173 = vpack.c.b16 %v164, %v163
    %v174 = vpack.c.b16 %v166, %v165
    %183 = vmatprep.subr.bf16.mxu0 0
    %184 = vmatpush1.bf16.msra.mxu0 %v174
    %185 = vmatprep.subr.bf16.mxu0 0
    %186 = vmatpush1.bf16.msra.mxu0 %v173
    %187 = vmatprep.subr.bf16.mxu0 0
    %188 = vmatpush1.bf16.msra.mxu0 %v172
    %189 = vmatprep.subr.bf16.mxu0 0
    %190 = vmatpush1.bf16.msra.mxu0 %v171
    %191 = vmatprep.subr.bf16.mxu0 0
    %192 = vmatpush1.bf16.msra.mxu0 %v170
    %193 = vmatprep.subr.bf16.mxu0 0
    %194 = vmatpush1.bf16.msra.mxu0 %v169
    %195 = vmatprep.subr.bf16.mxu0 0
    %196 = vmatpush1.bf16.msra.mxu0 %v168
    %197 = vmatprep.subr.bf16.mxu0 0
    %198 = vmatpush1.bf16.msra.mxu0 %v167
    %199 = vmatprep.subr.bf16.mxu0 0
    %200 = vmatpush2.bf16.msra.mxu0 0
    %201 = vmatprep.subr.bf16.mxu0 0
    %202 = vmatpush2.bf16.msra.mxu0 0
    %203 = vmatprep.subr.bf16.mxu0 0
    %204 = vmatpush2.bf16.msra.mxu0 0
    %205 = vmatprep.subr.bf16.mxu0 0
    %206 = vmatpush2.bf16.msra.mxu0 0
    %207 = vmatprep.subr.bf16.mxu0 0
    %208 = vmatpush2.bf16.msra.mxu0 0
    %209 = vmatprep.subr.bf16.mxu0 0
    %210 = vmatpush2.bf16.msra.mxu0 0
    %211 = vmatprep.subr.bf16.mxu0 0
    %212 = vmatpush2.bf16.msra.mxu0 0
    %213 = vmatprep.subr.bf16.mxu0 0
    %214 = vmatpush2.bf16.msra.mxu0 0
    %215 = vmatprep.mubr.bf16.mxu0 0
    %216 = vmatmul.mubr.bf16.gmra.mxu0 %v111
    %v217 = vpop.f32.mrf.mxu0
    %v218 = vadd.f32 %v133, %v217
    %v219 = vpop.f32.mrf.mxu0
    %v220 = vpop.f32.mrf.mxu0
    %v221 = vpop.f32.mrf.mxu0
    %222 = vdwg.mxu0
    %v223 = vmax.f32 %v218, 0.0
    %v224 = vpack.c.bf16 %v223, %v223
    %v225 = vld [vmem:[%s5] sm:$0xf]
    %v226 = vld [vmem:[%s5 + $0x4] sm:$0xf]
    %v227 = vld [vmem:[%s5 + $0x8] sm:$0xf]
    %v228 = vld [vmem:[%s5 + $0xc] sm:$0xf]
    %v229 = vld [vmem:[%s5 + $0x10] sm:$0xf]
    %v230 = vld [vmem:[%s5 + $0x14] sm:$0xf]
    %v231 = vld [vmem:[%s5 + $0x18] sm:$0xf]
    %v232 = vld [vmem:[%s5 + $0x1c] sm:$0xf]
    %v233 = vld [vmem:[%s5 + $0x20] sm:$0xf]
    %v234 = vld [vmem:[%s5 + $0x24] sm:$0xf]
    %v235 = vld [vmem:[%s5 + $0x28] sm:$0xf]
    %v236 = vld [vmem:[%s5 + $0x2c] sm:$0xf]
    %v237 = vld [vmem:[%s5 + $0x30] sm:$0xf]
    %v238 = vld [vmem:[%s5 + $0x34] sm:$0xf]
    %v239 = vld [vmem:[%s5 + $0x38] sm:$0xf]
    %v240 = vld [vmem:[%s5 + $0x3c] sm:$0xf]
    %v241 = vld [vmem:[%s6] sm:$0x1]
    %v243 = vlaneseq
    %v244 = vshrl.u32 %v243, 7
    %v245 = vsub.s32 0, %v244
    %v246 = vrot.slane %v241, %v245
    %v264 = vunpack.c.l.b16 %v225
    %v265 = vunpack.c.l.b16 %v226
    %v266 = vunpack.c.l.b16 %v227
    %v267 = vunpack.c.l.b16 %v228
    %v268 = vunpack.c.l.b16 %v229
    %v269 = vunpack.c.l.b16 %v230
    %v270 = vunpack.c.l.b16 %v231
    %v271 = vunpack.c.l.b16 %v232
    %v272 = vunpack.c.l.b16 %v233
    %v273 = vunpack.c.l.b16 %v234
    %v274 = vunpack.c.l.b16 %v235
    %v275 = vunpack.c.l.b16 %v236
    %v276 = vunpack.c.l.b16 %v237
    %v277 = vunpack.c.l.b16 %v238
    %v278 = vunpack.c.l.b16 %v239
    %v279 = vunpack.c.l.b16 %v240
    %v280 = vpack.c.b16 %v265, %v264
    %v281 = vpack.c.b16 %v267, %v266
    %v282 = vpack.c.b16 %v269, %v268
    %v283 = vpack.c.b16 %v271, %v270
    %v284 = vpack.c.b16 %v273, %v272
    %v285 = vpack.c.b16 %v275, %v274
    %v286 = vpack.c.b16 %v277, %v276
    %v287 = vpack.c.b16 %v279, %v278
    %296 = vmatprep.subr.bf16.mxu0 0
    %297 = vmatpush1.bf16.msra.mxu0 %v287
    %298 = vmatprep.subr.bf16.mxu0 0
    %299 = vmatpush1.bf16.msra.mxu0 %v286
    %300 = vmatprep.subr.bf16.mxu0 0
    %301 = vmatpush1.bf16.msra.mxu0 %v285
    %302 = vmatprep.subr.bf16.mxu0 0
    %303 = vmatpush1.bf16.msra.mxu0 %v284
    %304 = vmatprep.subr.bf16.mxu0 0
    %305 = vmatpush1.bf16.msra.mxu0 %v283
    %306 = vmatprep.subr.bf16.mxu0 0
    %307 = vmatpush1.bf16.msra.mxu0 %v282
    %308 = vmatprep.subr.bf16.mxu0 0
    %309 = vmatpush1.bf16.msra.mxu0 %v281
    %310 = vmatprep.subr.bf16.mxu0 0
    %311 = vmatpush1.bf16.msra.mxu0 %v280
    %312 = vmatprep.subr.bf16.mxu0 0
    %313 = vmatpush2.bf16.msra.mxu0 0
    %314 = vmatprep.subr.bf16.mxu0 0
    %315 = vmatpush2.bf16.msra.mxu0 0
    %316 = vmatprep.subr.bf16.mxu0 0
    %317 = vmatpush2.bf16.msra.mxu0 0
    %318 = vmatprep.subr.bf16.mxu0 0
    %319 = vmatpush2.bf16.msra.mxu0 0
    %320 = vmatprep.subr.bf16.mxu0 0
    %321 = vmatpush2.bf16.msra.mxu0 0
    %322 = vmatprep.subr.bf16.mxu0 0
    %323 = vmatpush2.bf16.msra.mxu0 0
    %324 = vmatprep.subr.bf16.mxu0 0
    %325 = vmatpush2.bf16.msra.mxu0 0
    %326 = vmatprep.subr.bf16.mxu0 0
    %327 = vmatpush2.bf16.msra.mxu0 0
    %328 = vmatprep.mubr.bf16.mxu0 0
    %329 = vmatmul.mubr.bf16.gmra.mxu0 %v224
    %v330 = vpop.f32.mrf.mxu0
    %v331 = vadd.f32 %v246, %v330
    %v332 = vpop.f32.mrf.mxu0
    %v333 = vpop.f32.mrf.mxu0
    %v334 = vpop.f32.mrf.mxu0
    %335 = vdwg.mxu0
    %vm336 = vcmask 130048
    %v337 = vsel %vm336, %v331, -inf
    %338 = vmax.xlane.f32.xlu0 %v337
    %v339 = vpop.xlane.xlu0 %338
    %v340 = vsub.f32 %v331, %v339
    %v341 = vmul.f32 %v340, 1.442695
    %v342 = vpow.pop %v341
    %v343 = vsel %vm336, %v342, 0.0
    %344 = vadd.xlane.f32.xlu0 %v343
    %v345 = vpop.xlane.xlu0 %344
    %v346 = vrcp.pop %v345
    %v347 = vmul.f32 %v342, %v346
    %348 = vst.msk [vmem:[#allocation5] sm:$0xff] %vm336, %v347
    // Predicated region
    $region34: #{tpu_custom_call.1} parent=1 // pred_check
      _
    $region35: #{tpu_custom_call.1} parent=1 // pred_check_branch
      %350 = sbr.rel (0) target = $region37
    $region36: #{tpu_custom_call.1} parent=1 // pred_region
      %s352 = ssub.s32 128, 128
      %353 = vsyncadd [#allocation4], %s352
      %s355 = sshll.u32 [#allocation5], 4
      %s356 = int_to_ptr.vmem [resolvable:$true] %s355
      %358 = dma.vmem_to_hbm [thread:$0]  %s356, 128, %s7, [#allocation4]
    $region37: #{tpu_custom_call.1} parent=1 // pred_fallthru
      _
    // Predicated region
    $region38: #{tpu_custom_call.1} parent=1 // pred_check
      _
    $region39: #{tpu_custom_call.1} parent=1 // pred_check_branch
      %360 = sbr.rel (0) target = $region41
    $region40: #{tpu_custom_call.1} parent=1 // pred_region
      %361 = dma.done [#allocation4], 128
    $region41: #{tpu_custom_call.1} parent=1 // pred_fallthru
      _
    %362 = vsyncpa [#allocation3], 1
    %363 = vsyncpa [#allocation4], 1

</llo_original>
